<compile_context>
chip_gen: v5e
topology: v5e:2x2
jax: 0.10.0
libtpu: 0.0.40
codegen_flags: <defaults>
</compile_context>

<pallas_src>
import functools

import jax
import jax.numpy as jnp
from jax.experimental import pallas as pl
from jax.experimental.pallas import tpu as pltpu


# --------------------------------------------------------------------------- #
# Kernel
# --------------------------------------------------------------------------- #
def _gelu_tanh_f32(x):
    # GELU with tanh approximation, matching nn.GELU(approximate='tanh'); f32.
    c = 0.7978845608028654  # sqrt(2/pi)
    return 0.5 * x * (1.0 + jnp.tanh(c * (x + 0.044715 * x * x * x)))


def _mlp_kernel(x_ref, w1_ref, b1_ref, w2_ref, b2_ref, o_ref):
    # x_ref:(tm,C_in)  w1_ref:(C_in,H)  b1_ref:(1,H)  w2_ref:(H,H)  b2_ref:(1,H)
    # fc1: MXU in operand dtype (bf16 in the tuned path), f32 accumulation.
    h = jnp.dot(x_ref[...], w1_ref[...], preferred_element_type=jnp.float32)
    h = h + b1_ref[...].astype(jnp.float32)     # broadcast (1,H) -> (tm,H)
    h = _gelu_tanh_f32(h)                       # f32 epilogue (VPU/EUP; v5e-safe)
    h = h.astype(w2_ref.dtype)                  # bf16 again right after the GELU
    # fc2: second MXU pass, f32 accumulation.
    o = jnp.dot(h, w2_ref[...], preferred_element_type=jnp.float32)
    o = o + b2_ref[...].astype(jnp.float32)
    o_ref[...] = o.astype(o_ref.dtype)


# --------------------------------------------------------------------------- #
# Wrapper helpers
# --------------------------------------------------------------------------- #
def _round_up(x, m):
    return ((x + m - 1) // m) * m


def _probe_buffered():
    # Static (trace-free) probe for pipeline_mode=pl.Buffered support.
    if not hasattr(pl, "Buffered"):
        return False
    try:
        pl.BlockSpec((8, 128), lambda i: (0, 0), pipeline_mode=pl.Buffered(1))
        return True
    except Exception:
        return False


_HAS_BUFFERED = _probe_buffered()


def _resident_spec(block_shape):
    # Constant-index operands (weights/biases): keep them resident and
    # single-buffered instead of paying 2x VMEM for useless double-buffering.
    if _HAS_BUFFERED:
        return pl.BlockSpec(block_shape, lambda i: (0, 0),
                            pipeline_mode=pl.Buffered(1))
    return pl.BlockSpec(block_shape, lambda i: (0, 0))


def _vmem_limit_bytes(footprint_bytes):
    try:
        cap = pltpu.get_tpu_info().vmem_capacity_bytes
    except Exception:
        cap = 64 * 1024 * 1024                  # conservative (v7x-sized) fallback
    limit = max(footprint_bytes + (8 << 20), 32 << 20)
    return int(min(limit, int(cap * 0.9)))


# --------------------------------------------------------------------------- #
# Forward
# --------------------------------------------------------------------------- #
@functools.partial(jax.jit, static_argnames=("tm", "compute_dtype"))
def caption_embedder_forward(caption, w1, b1, w2, b2, *, tm=256,
                             compute_dtype=jnp.bfloat16):
    """caption: [B, T, C_in] -> [B, T, H]  (fused MLP, single pallas_call).

    compute_dtype: MXU operand dtype (bf16 by default; accumulation is f32).
    tm: row tile; sweep 256->512 on v6e for large B*T, keep <=256-384 on v7x.
    """
    B, T, C_in = caption.shape
    H = w2.shape[1]
    M = B * T
    out_dtype = caption.dtype

    # bf16 MXU operands; biases stay f32 for the f32 epilogue.
    x2d = caption.reshape(M, C_in).astype(compute_dtype)
    w1c = w1.astype(compute_dtype)
    w2c = w2.astype(compute_dtype)
    b1_2d = b1.reshape(1, H).astype(jnp.float32)
    b2_2d = b2.reshape(1, H).astype(jnp.float32)

    # Row tile: multiple of 16 (bf16 sublane packing). Cap at ~M/2 so the
    # "parallel" row grid has >=2 steps and both v7x TensorCores get work.
    tm = max(16, _round_up(tm, 16))
    if M <= 16:
        tm_eff = M                               # single full-extent block
    else:
        tm_eff = min(tm, _round_up(pl.cdiv(M, 2), 16))
    grid_m = pl.cdiv(M, tm_eff)                  # ragged edge block is masked

    # Footprint-derived scoped-VMEM limit (v5e default 16 MiB is too small;
    # v7x physical is only 64 MiB, so never ask for more than ~90% of it).
    itemsize = jnp.dtype(compute_dtype).itemsize
    w_bytes = (w1c.size + w2c.size) * itemsize + (b1_2d.size + b2_2d.size) * 4
    if not _HAS_BUFFERED:
        w_bytes *= 2                             # weights double-buffered
    act_bytes = 2 * tm_eff * C_in * itemsize                        # x tiles
    act_bytes += 2 * tm_eff * H * jnp.dtype(out_dtype).itemsize     # out tiles
    act_bytes += 4 * tm_eff * H * 4                                 # f32 temps
    vmem_limit = _vmem_limit_bytes(w_bytes + act_bytes)

    cost = pl.CostEstimate(
        flops=2 * M * (C_in * H + H * H),
        transcendentals=M * H,                   # one tanh per hidden element
        bytes_accessed=(x2d.size * itemsize
                        + (w1c.size + w2c.size) * itemsize
                        + (b1_2d.size + b2_2d.size) * 4
                        + M * H * jnp.dtype(out_dtype).itemsize),
    )

    out2d = pl.pallas_call(
        _mlp_kernel,
        out_shape=jax.ShapeDtypeStruct((M, H), out_dtype),
        grid_spec=pltpu.PrefetchScalarGridSpec(
            num_scalar_prefetch=0,
            grid=(grid_m,),
            in_specs=[
                pl.BlockSpec((tm_eff, C_in), lambda i: (i, 0)),  # streamed rows
                _resident_spec((C_in, H)),                       # fc1 weight
                _resident_spec((1, H)),                          # fc1 bias
                _resident_spec((H, H)),                          # fc2 weight
                _resident_spec((1, H)),                          # fc2 bias
            ],
            out_specs=pl.BlockSpec((tm_eff, H), lambda i: (i, 0)),
        ),
        compiler_params=pltpu.CompilerParams(
            dimension_semantics=("parallel",),
            vmem_limit_bytes=vmem_limit,
        ),
        cost_estimate=cost,
    )(x2d, w1c, b1_2d, w2c, b2_2d)

    return out2d.reshape(B, T, H)


# --------------------------------------------------------------------------- #
# Parameter init (shapes from the module __init__) and reference
# --------------------------------------------------------------------------- #
def init_caption_embedder_params(key, in_channels, hidden_size, token_nums):
    k1, k2, k3 = jax.random.split(key, 3)
    # Mlp: fc1 (in -> hidden), fc2 (hidden -> hidden). Stored as (in, out) for x @ W.
    w1 = jax.random.normal(k1, (in_channels, hidden_size), jnp.float32) * 0.02
    b1 = jnp.zeros((hidden_size,), jnp.float32)
    w2 = jax.random.normal(k2, (hidden_size, hidden_size), jnp.float32) * 0.02
    b2 = jnp.zeros((hidden_size,), jnp.float32)
    # Registered buffer (unused by forward, kept for parity with the module).
    y_embedding = (jax.random.normal(k3, (token_nums, in_channels), jnp.float32)
                   / in_channels ** 0.5)
    return w1, b1, w2, b2, y_embedding


def _reference_forward(caption, w1, b1, w2, b2):
    h = _gelu_tanh_f32(caption @ w1 + b1)
    return h @ w2 + b2


# --------------------------------------------------------------------------- #
# Self-test
# --------------------------------------------------------------------------- #
if __name__ == "__main__":
    # Small shapes consistent with the module: batch=2, token_nums=8,
    # in_channels=16, hidden_size=32.
    B, T, C_in, H = 2, 8, 16, 32

    key = jax.random.PRNGKey(0)
    kp, kx = jax.random.split(key)
    w1, b1, w2, b2, y_embedding = init_caption_embedder_params(
        kp, C_in, H, token_nums=T)
    caption = jax.random.normal(kx, (B, T, C_in), jnp.float32)

    ref = _reference_forward(caption, w1, b1, w2, b2)

    # f32-operand path: tighter check of the fused math vs pure-JAX reference.
    out_f32 = caption_embedder_forward(caption, w1, b1, w2, b2,
                                       compute_dtype=jnp.float32)
    out_f32 = jax.block_until_ready(out_f32)
    assert out_f32.shape == (B, T, H)
    assert jnp.allclose(out_f32, ref, atol=2e-3, rtol=2e-2), \
        "f32-operand path mismatch vs reference"

    # Default (perf-tuned) path: bf16 MXU operands, f32 accumulation + epilogue.
    out = caption_embedder_forward(caption, w1, b1, w2, b2)
    out = jax.block_until_ready(out)
    assert out.shape == (B, T, H)
    assert jnp.allclose(out.astype(jnp.float32), ref, atol=1e-2, rtol=1e-1), \
        "bf16 path mismatch vs reference"

    print("KERNEL_OK")
</pallas_src>

<mosaic_0001>
module attributes {stable_mosaic.version = 11 : i64} {
  func.func @_mlp_kernel(%arg0: i32, %arg1: memref<16x16xf32, #tpu.memory_space<vmem>>, %arg2: memref<16x32xf32, #tpu.memory_space<vmem>>, %arg3: memref<1x32xf32, #tpu.memory_space<vmem>>, %arg4: memref<32x32xf32, #tpu.memory_space<vmem>>, %arg5: memref<1x32xf32, #tpu.memory_space<vmem>>, %arg6: memref<16x32xf32, #tpu.memory_space<vmem>>) attributes {dimension_semantics = [#tpu.dimension_semantics<parallel>], iteration_bounds = array<i64: 1>, scalar_prefetch = 0 : i64, scratch_operands = 0 : i64, tpu.core_type = #tpu.core_type<tc>, window_params = [{transform_indices = @transform_0, window_bounds = array<i64: 16, 16>}, {pipeline_mode = #tpu.pipeline_mode<synchronous>, transform_indices = @transform_1, window_bounds = array<i64: 16, 32>}, {pipeline_mode = #tpu.pipeline_mode<synchronous>, transform_indices = @transform_2, window_bounds = array<i64: 1, 32>}, {pipeline_mode = #tpu.pipeline_mode<synchronous>, transform_indices = @transform_3, window_bounds = array<i64: 32, 32>}, {pipeline_mode = #tpu.pipeline_mode<synchronous>, transform_indices = @transform_4, window_bounds = array<i64: 1, 32>}, {transform_indices = @transform_5, window_bounds = array<i64: 16, 32>}]} {
    %c0 = arith.constant 0 : index
    %c0_0 = arith.constant 0 : index
    %0 = vector.load %arg1[%c0, %c0_0] : memref<16x16xf32, #tpu.memory_space<vmem>>, vector<16x16xf32>
    %c0_1 = arith.constant 0 : index
    %c0_2 = arith.constant 0 : index
    %1 = vector.load %arg2[%c0_1, %c0_2] : memref<16x32xf32, #tpu.memory_space<vmem>>, vector<16x32xf32>
    %cst = arith.constant dense<0.000000e+00> : vector<16x32xf32>
    %2 = tpu.matmul %0, %1, %cst {dimension_numbers = #tpu.dot_dimension_numbers<[1], [0], [0], [1], [0, 0, 1, 1], [], []>} : vector<16x16xf32>, vector<16x32xf32>, vector<16x32xf32> -> vector<16x32xf32>
    %c0_3 = arith.constant 0 : index
    %c0_4 = arith.constant 0 : index
    %3 = vector.load %arg3[%c0_3, %c0_4] : memref<1x32xf32, #tpu.memory_space<vmem>>, vector<1x32xf32>
    %4 = vector.broadcast %3 : vector<1x32xf32> to vector<16x32xf32>
    %5 = arith.addf %2, %4 : vector<16x32xf32>
    %cst_5 = arith.constant 5.000000e-01 : f32
    %6 = vector.broadcast %cst_5 : f32 to vector<16x32xf32>
    %7 = arith.mulf %6, %5 : vector<16x32xf32>
    %cst_6 = arith.constant 4.471500e-02 : f32
    %8 = vector.broadcast %cst_6 : f32 to vector<16x32xf32>
    %9 = arith.mulf %8, %5 : vector<16x32xf32>
    %10 = arith.mulf %9, %5 : vector<16x32xf32>
    %11 = arith.mulf %10, %5 : vector<16x32xf32>
    %12 = arith.addf %5, %11 : vector<16x32xf32>
    %cst_7 = arith.constant 0.797884583 : f32
    %13 = vector.broadcast %cst_7 : f32 to vector<16x32xf32>
    %14 = arith.mulf %13, %12 : vector<16x32xf32>
    %15 = math.tanh %14 : vector<16x32xf32>
    %cst_8 = arith.constant 1.000000e+00 : f32
    %16 = vector.broadcast %cst_8 : f32 to vector<16x32xf32>
    %17 = arith.addf %16, %15 : vector<16x32xf32>
    %18 = arith.mulf %7, %17 : vector<16x32xf32>
    %c0_9 = arith.constant 0 : index
    %c0_10 = arith.constant 0 : index
    %19 = vector.load %arg4[%c0_9, %c0_10] : memref<32x32xf32, #tpu.memory_space<vmem>>, vector<32x32xf32>
    %cst_11 = arith.constant dense<0.000000e+00> : vector<16x32xf32>
    %20 = tpu.matmul %18, %19, %cst_11 {dimension_numbers = #tpu.dot_dimension_numbers<[1], [0], [0], [1], [0, 0, 1, 1], [], []>} : vector<16x32xf32>, vector<32x32xf32>, vector<16x32xf32> -> vector<16x32xf32>
    %c0_12 = arith.constant 0 : index
    %c0_13 = arith.constant 0 : index
    %21 = vector.load %arg5[%c0_12, %c0_13] : memref<1x32xf32, #tpu.memory_space<vmem>>, vector<1x32xf32>
    %22 = vector.broadcast %21 : vector<1x32xf32> to vector<16x32xf32>
    %23 = arith.addf %20, %22 : vector<16x32xf32>
    %c0_14 = arith.constant 0 : index
    %c0_15 = arith.constant 0 : index
    %24 = vector.load %arg6[%c0_14, %c0_15] : memref<16x32xf32, #tpu.memory_space<vmem>>, vector<16x32xf32>
    tpu.vector_store %arg6[%c0_14, %c0_15], %23 {strides = array<i32>} : memref<16x32xf32, #tpu.memory_space<vmem>>, vector<16x32xf32>,
    return
  }
  func.func @transform_0(%arg0: i32) -> (i32, i32) {
    %c0_i32 = arith.constant 0 : i32
    %c0_i32_0 = arith.constant 0 : i32
    return %arg0, %c0_i32 : i32, i32
  }
  func.func @transform_1(%arg0: i32) -> (i32, i32) {
    %c0_i32 = arith.constant 0 : i32
    %c0_i32_0 = arith.constant 0 : i32
    %c0_i32_1 = arith.constant 0 : i32
    return %c0_i32, %c0_i32_0 : i32, i32
  }
  func.func @transform_2(%arg0: i32) -> (i32, i32) {
    %c0_i32 = arith.constant 0 : i32
    %c0_i32_0 = arith.constant 0 : i32
    %c0_i32_1 = arith.constant 0 : i32
    return %c0_i32, %c0_i32_0 : i32, i32
  }
  func.func @transform_3(%arg0: i32) -> (i32, i32) {
    %c0_i32 = arith.constant 0 : i32
    %c0_i32_0 = arith.constant 0 : i32
    %c0_i32_1 = arith.constant 0 : i32
    return %c0_i32, %c0_i32_0 : i32, i32
  }
  func.func @transform_4(%arg0: i32) -> (i32, i32) {
    %c0_i32 = arith.constant 0 : i32
    %c0_i32_0 = arith.constant 0 : i32
    %c0_i32_1 = arith.constant 0 : i32
    return %c0_i32, %c0_i32_0 : i32, i32
  }
  func.func @transform_5(%arg0: i32) -> (i32, i32) {
    %c0_i32 = arith.constant 0 : i32
    %c0_i32_0 = arith.constant 0 : i32
    return %arg0, %c0_i32 : i32, i32
  }
}

</mosaic_0001>

<llo_original>
// kernel: caption_embedder_forward.1
$region0: #{caption_embedder_forward.1}
  #allocation0 [shape = 'u32[]', space=smem, size = 0x4, offset = 0x4, fixed_abs, tag = 'smem constant byte address 0x4 - core index']
  #allocation1 [shape = 'u32[72,128]{1,0:T(1,128)}', space=vmem, size = 0x9000, scoped, tag = 'internal scratch']
  %s0 = inlined_call_operand.hbm [shape: f32[16,16], index: 0, kind: input, shape index: {}]
  %s1 = inlined_call_operand.hbm [shape: f32[16,32], index: 1, kind: input, shape index: {}]
  %s2 = inlined_call_operand.vmem [shape: f32[1,32], index: 2, kind: input, shape index: {}]
  %s3 = inlined_call_operand.hbm [shape: f32[32,32], index: 3, kind: input, shape index: {}]
  %s4 = inlined_call_operand.vmem [shape: f32[1,32], index: 4, kind: input, shape index: {}]
  %s5 = inlined_call_operand.hbm [shape: f32[16,32], index: 5, kind: output, shape index: {}]
  %s6 = sld [smem:[#allocation0]]
  $region42: #{caption_embedder_forward.1} parent=0
    _
  %s8 = ssub.s32 1, %s6
  %s9 = scalar_select 0, %s8, %s6
  $region1: #{caption_embedder_forward.1} parent=0
    #allocation2 [shape = 'u8[8192]{0}', space=vmem, size = 0x2000, scoped, tag = 'input window, operand 0, single buffered']
    #allocation3 [shape = 's32[1]{0}', space=sflag, size = 0x4, scoped, tag = 'scoped memory for caption_embedder_forward.1']
    #allocation4 [shape = 's32[1]{0}', space=sflag, size = 0x4, scoped, tag = 'scoped memory for caption_embedder_forward.1']
    #allocation5 [shape = 'u8[8192]{0}', space=vmem, size = 0x2000, scoped, tag = 'input window, operand 1, single buffered']
    #allocation6 [shape = 's32[1]{0}', space=sflag, size = 0x4, scoped, tag = 'scoped memory for caption_embedder_forward.1']
    #allocation7 [shape = 'u8[16384]{0}', space=vmem, size = 0x4000, scoped, tag = 'input window, operand 3, single buffered']
    #allocation8 [shape = 'u8[8192]{0}', space=vmem, size = 0x2000, scoped, tag = 'output window, operand 0, single buffered']
    %10 = vsyncpa [#allocation3], 0
    %11 = vsyncpa [#allocation6], 0
    %12 = vsyncpa [#allocation4], 0
    // Predicated region
    $region2: #{caption_embedder_forward.1} parent=1 // pred_check
      _
    $region3: #{caption_embedder_forward.1} parent=1 // pred_check_branch
      %14 = sbr.rel (0) target = $region5
    $region4: #{caption_embedder_forward.1} parent=1 // pred_region
      %16 = vsyncadd [#allocation3], 0
      %s17 = sshll.u32 %s0, 4
      %s18 = int_to_ptr.hbm [resolvable:$true] %s17
      %s19 = sshll.u32 [#allocation2], 4
      %s20 = int_to_ptr.vmem [resolvable:$true] %s19
      %25 = dma.hbm_to_vmem [thread:$0]  %s18, 256, %s20, [#allocation3], 128, 128, 8
    $region5: #{caption_embedder_forward.1} parent=1 // pred_fallthru
      _
    // Predicated region
    $region6: #{caption_embedder_forward.1} parent=1 // pred_check
      _
    $region7: #{caption_embedder_forward.1} parent=1 // pred_check_branch
      %27 = sbr.rel (0) target = $region9
    $region8: #{caption_embedder_forward.1} parent=1 // pred_region
      %29 = vsyncadd [#allocation6], 0
      %s30 = sshll.u32 %s1, 4
      %s31 = int_to_ptr.hbm [resolvable:$true] %s30
      %s32 = sshll.u32 [#allocation5], 4
      %s33 = int_to_ptr.vmem [resolvable:$true] %s32
      %38 = dma.hbm_to_vmem [thread:$0]  %s31, 256, %s33, [#allocation6], 128, 128, 8
    $region9: #{caption_embedder_forward.1} parent=1 // pred_fallthru
      _
    // Predicated region
    $region10: #{caption_embedder_forward.1} parent=1 // pred_check
      _
    $region11: #{caption_embedder_forward.1} parent=1 // pred_check_branch
      %40 = sbr.rel (0) target = $region13
    $region12: #{caption_embedder_forward.1} parent=1 // pred_region
      _
    $region13: #{caption_embedder_forward.1} parent=1 // pred_fallthru
      _
    // Predicated region
    $region14: #{caption_embedder_forward.1} parent=1 // pred_check
      _
    $region15: #{caption_embedder_forward.1} parent=1 // pred_check_branch
      %42 = sbr.rel (0) target = $region17
    $region16: #{caption_embedder_forward.1} parent=1 // pred_region
      %44 = vsyncadd [#allocation6], 0
      %s45 = sshll.u32 %s3, 4
      %s46 = int_to_ptr.hbm [resolvable:$true] %s45
      %s47 = sshll.u32 [#allocation7], 4
      %s48 = int_to_ptr.vmem [resolvable:$true] %s47
      %53 = dma.hbm_to_vmem [thread:$0]  %s46, 512, %s48, [#allocation6], 128, 128, 8
    $region17: #{caption_embedder_forward.1} parent=1 // pred_fallthru
      _
    // Predicated region
    $region18: #{caption_embedder_forward.1} parent=1 // pred_check
      _
    $region19: #{caption_embedder_forward.1} parent=1 // pred_check_branch
      %55 = sbr.rel (0) target = $region21
    $region20: #{caption_embedder_forward.1} parent=1 // pred_region
      _
    $region21: #{caption_embedder_forward.1} parent=1 // pred_fallthru
      _
    // Predicated region
    $region22: #{caption_embedder_forward.1} parent=1 // pred_check
      _
    $region23: #{caption_embedder_forward.1} parent=1 // pred_check_branch
      %57 = sbr.rel (0) target = $region25
    $region24: #{caption_embedder_forward.1} parent=1 // pred_region
      %59 = dma.done [#allocation3], 256
    $region25: #{caption_embedder_forward.1} parent=1 // pred_fallthru
      _
    // Predicated region
    $region26: #{caption_embedder_forward.1} parent=1 // pred_check
      _
    $region27: #{caption_embedder_forward.1} parent=1 // pred_check_branch
      %61 = sbr.rel (0) target = $region29
    $region28: #{caption_embedder_forward.1} parent=1 // pred_region
      %63 = dma.done [#allocation6], 256
    $region29: #{caption_embedder_forward.1} parent=1 // pred_fallthru
      _
    // Predicated region
    $region30: #{caption_embedder_forward.1} parent=1 // pred_check
      _
    $region31: #{caption_embedder_forward.1} parent=1 // pred_check_branch
      %65 = sbr.rel (0) target = $region33
    $region32: #{caption_embedder_forward.1} parent=1 // pred_region
      %67 = dma.done [#allocation6], 512
    $region33: #{caption_embedder_forward.1} parent=1 // pred_fallthru
      _
    %v68 = vld [vmem:[#allocation2] sm:$0xff]
    %v69 = vld [vmem:[#allocation2 + $0x8] sm:$0xff]
    %v70 = vld [vmem:[#allocation5] sm:$0xff]
    %v71 = vld [vmem:[#allocation5 + $0x8] sm:$0xff]
    %v72 = vld [vmem:[%s2] sm:$0x1]
    %v74 = vperm.slane %v72, 0
    %vm76 = vcmask 130048
    %v78 = vsel %vm76, %v68, 0
    %v81 = vsel %vm76, %v69, 0
    %83 = vmatpush.msra.mxu0 0.0
    %84 = vmatpush.msra.mxu0 0.0
    %85 = vmatpush.msra.mxu0 0.0
    %86 = vmatpush.msra.mxu0 0.0
    %87 = vmatpush.msra.mxu0 0.0
    %88 = vmatpush.msra.mxu0 0.0
    %89 = vmatpush.msra.mxu0 0.0
    %90 = vmatpush.msra.mxu0 0.0
    %91 = vmatpush.msra.mxu0 0.0
    %92 = vmatpush.msra.mxu0 0.0
    %93 = vmatpush.msra.mxu0 0.0
    %94 = vmatpush.msra.mxu0 0.0
    %95 = vmatpush.msra.mxu0 0.0
    %96 = vmatpush.msra.mxu0 0.0
    %97 = vmatpush.msra.mxu0 %v71
    %98 = vmatpush.msra.mxu0 %v70
    %99 = vmatmul.f32.gmra.mxu0 %v78
    %v100 = vpop.f32.mrf.mxu0
    %v101 = vadd.f32 %v74, %v100
    %102 = vmatmul.f32.gmra.mxu0 %v81
    %v103 = vpop.f32.mrf.mxu0
    %v104 = vadd.f32 %v74, %v103
    %105 = vdwg.mxu0
    %v106 = vmul.f32 %v101, 0.5
    %v107 = vmul.f32 %v104, 0.5
    %v108 = vmul.f32 %v101, 0.044715
    %v109 = vmul.f32 %v104, 0.044715
    %v110 = vmul.f32 %v108, %v101
    %v111 = vmul.f32 %v109, %v104
    %v112 = vmul.f32 %v110, %v101
    %v113 = vmul.f32 %v111, %v104
    %v114 = vadd.f32 %v101, %v112
    %v115 = vadd.f32 %v104, %v113
    %v116 = vmul.f32 %v114, 0.7978846
    %v117 = vmul.f32 %v115, 0.7978846
    %v118 = vtanh.pop %v116
    %v119 = vtanh.pop %v117
    %v120 = vadd.f32 %v118, 1.0
    %v121 = vadd.f32 %v119, 1.0
    %v122 = vmul.f32 %v106, %v120
    %v123 = vmul.f32 %v107, %v121
    %v124 = vld [vmem:[#allocation7] sm:$0xff]
    %v125 = vld [vmem:[#allocation7 + $0x8] sm:$0xff]
    %v126 = vld [vmem:[#allocation7 + $0x10] sm:$0xff]
    %v127 = vld [vmem:[#allocation7 + $0x18] sm:$0xff]
    %v128 = vld [vmem:[%s4] sm:$0x1]
    %v130 = vperm.slane %v128, 0
    %vm132 = vcmask 261120
    %v134 = vsel %vm132, %v122, 0
    %v137 = vsel %vm132, %v123, 0
    %139 = vmatpush.msra.mxu0 0.0
    %140 = vmatpush.msra.mxu0 0.0
    %141 = vmatpush.msra.mxu0 0.0
    %142 = vmatpush.msra.mxu0 0.0
    %143 = vmatpush.msra.mxu0 0.0
    %144 = vmatpush.msra.mxu0 0.0
    %145 = vmatpush.msra.mxu0 0.0
    %146 = vmatpush.msra.mxu0 0.0
    %147 = vmatpush.msra.mxu0 0.0
    %148 = vmatpush.msra.mxu0 0.0
    %149 = vmatpush.msra.mxu0 0.0
    %150 = vmatpush.msra.mxu0 0.0
    %151 = vmatpush.msra.mxu0 %v127
    %152 = vmatpush.msra.mxu0 %v126
    %153 = vmatpush.msra.mxu0 %v125
    %154 = vmatpush.msra.mxu0 %v124
    %155 = vmatmul.f32.gmra.mxu0 %v134
    %v156 = vpop.f32.mrf.mxu0
    %v157 = vadd.f32 %v130, %v156
    %158 = vmatmul.f32.gmra.mxu0 %v137
    %v159 = vpop.f32.mrf.mxu0
    %v160 = vadd.f32 %v130, %v159
    %161 = vdwg.mxu0
    %162 = vst.msk [vmem:[#allocation8] sm:$0xff] %vm132, %v157
    %163 = vst.msk [vmem:[#allocation8 + $0x8] sm:$0xff] %vm132, %v160
    // Predicated region
    $region34: #{caption_embedder_forward.1} parent=1 // pred_check
      _
    $region35: #{caption_embedder_forward.1} parent=1 // pred_check_branch
      %165 = sbr.rel (0) target = $region37
    $region36: #{caption_embedder_forward.1} parent=1 // pred_region
      %167 = vsyncadd [#allocation4], 0
      %s168 = sshll.u32 [#allocation8], 4
      %s169 = int_to_ptr.vmem [resolvable:$true] %s168
      %s170 = sshll.u32 %s5, 4
      %s171 = int_to_ptr.hbm [resolvable:$true] %s170
      %176 = dma.vmem_to_hbm [thread:$0]  %s169, 256, %s171, [#allocation4], 128, 128, 8
    $region37: #{caption_embedder_forward.1} parent=1 // pred_fallthru
      _
    // Predicated region
    $region38: #{caption_embedder_forward.1} parent=1 // pred_check
      _
    $region39: #{caption_embedder_forward.1} parent=1 // pred_check_branch
      %178 = sbr.rel (0) target = $region41
    $region40: #{caption_embedder_forward.1} parent=1 // pred_region
      %180 = dma.done [#allocation4], 256
    $region41: #{caption_embedder_forward.1} parent=1 // pred_fallthru
      _
    %181 = vsyncpa [#allocation3], 1
    %182 = vsyncpa [#allocation6], 1
    %183 = vsyncpa [#allocation4], 1

</llo_original>
